<compile_context>
chip_gen: v7x
topology: tpu7x:2x2x1
jax: 0.10.0
libtpu: 0.0.40
codegen_flags: <defaults>
</compile_context>

<pallas_src>
import functools

import jax
import jax.numpy as jnp
from jax.experimental import pallas as pl
from jax.experimental.pallas import tpu as pltpu

MARGIN = 0.5
EPS = 1e-9

# Number of independent partial sums (leading "parallel" grid axis).
NUM_PARTIALS = 2


def _cdiv(a, b):
    return -(-a // b)


def _round_up(x, m):
    return ((x + m - 1) // m) * m


def _contrastive_loss_kernel(f1_ref, f2_ref, t_ref, out_ref, acc_ref, *,
                             margin, eps):
    # f1_ref, f2_ref: (TM, D) feature tiles in VMEM (native dtype).
    # t_ref:          (TM, 1) float32 labels.
    # out_ref:        (1, 1, 1) float32 partial-sum output block (one per
    #                 value of the leading "parallel" grid axis).
    # acc_ref:        (1, 1, 1) float32 VMEM scratch accumulator that persists
    #                 across the inner ("arbitrary") reduction axis.
    i = pl.program_id(1)

    @pl.when(i == 0)
    def _zero():
        acc_ref[...] = jnp.zeros_like(acc_ref)

    # Upcast inside the kernel (free on the VPU) instead of in the wrapper.
    f1 = f1_ref[...].astype(jnp.float32)
    f2 = f2_ref[...].astype(jnp.float32)
    diff = f2 - f1                                            # (TM, D)
    distances = jnp.sum(diff * diff, axis=1, keepdims=True)   # (TM, 1)

    t = t_ref[...]                                            # (TM, 1) f32
    # torch: relu(margin - (d + eps).sqrt().pow(2)); sqrt-then-square is the
    # identity, so apply the hinge to (d + eps) directly (drops the EUP sqrt).
    hinge = jnp.maximum(margin - (distances + eps), 0.0)
    losses = t * distances + (1.0 - t) * hinge                # (TM, 1)

    # Scalar partial sum accumulated in the persistent scratch.
    acc_ref[...] += jnp.sum(losses)

    @pl.when(i == pl.num_programs(1) - 1)
    def _store():
        out_ref[...] = acc_ref[...]


def contrastive_loss(feature1, feature2, target, *, margin=MARGIN, eps=EPS,
                     size_average=True):
    """Pallas implementation of ContrastiveLoss.forward.

    feature1, feature2: (B, D) arrays (any float dtype; upcast in-kernel).
    target: (B,) array of 0/1 labels (any numeric/bool dtype).
    Returns a scalar float32.
    """
    f1 = jnp.asarray(feature1)
    f2 = jnp.asarray(feature2)
    if f1.ndim != 2 or f1.shape != f2.shape:
        raise ValueError("feature1/feature2 must both be (B, D)")
    B, D = f1.shape

    # The label stream is B*4 bytes (negligible next to the features), so the
    # wrapper-side f32 cast here costs nothing and keeps kernel dtypes simple.
    t = jnp.asarray(target).astype(jnp.float32).reshape(B, 1)

    # ---- batch-tile sizing (true VMEM footprint) ---------------------------
    # Per-row VMEM bytes:
    #   * 2 feature streams x 2 pipeline buffers, lanes padded to 128, native
    #     itemsize;
    #   * 2 label buffers: a (TM, 1) f32 tile occupies one 128-lane word/row;
    #   * ~2 f32 (TM, Dpad) intermediates (diff, diff^2) that Mosaic may
    #     materialise before the lane reduction.
    # Target <= 24 MiB of the 32 MiB scoped-VMEM limit requested below.
    itemsize = jnp.dtype(f1.dtype).itemsize
    d_pad = _round_up(max(D, 1), 128)
    per_row_bytes = (2 * 2 * d_pad * itemsize      # feature tiles (dbl-buffered)
                     + 2 * 128 * 4                 # label tiles (dbl-buffered)
                     + 2 * d_pad * 4)              # f32 intermediates
    vmem_budget = 24 * 1024 * 1024
    target_rows = max(8, min(8192, (vmem_budget // per_row_bytes) // 8 * 8))

    rows_per_partial = _cdiv(B, NUM_PARTIALS)
    tm = min(target_rows, _round_up(rows_per_partial, 8))
    nblk = _cdiv(rows_per_partial, tm)
    b_pad = NUM_PARTIALS * nblk * tm
    # Note: for extremely large D the feature dim could also be tiled (with a
    # carried per-row distance accumulator); full-D blocks keep the lane axis
    # dense and the row reduction in one pass, which is right for typical D.

    pad = b_pad - B
    if pad:
        # Zero features + target=1 => padded rows contribute exactly 0 to the
        # loss sum; the mean below divides by the true B.
        f1 = jnp.pad(f1, ((0, pad), (0, 0)))
        f2 = jnp.pad(f2, ((0, pad), (0, 0)))
        t = jnp.pad(t, ((0, pad), (0, 0)), constant_values=1.0)

    kernel = functools.partial(_contrastive_loss_kernel,
                               margin=float(margin), eps=float(eps))

    grid_spec = pltpu.PrefetchScalarGridSpec(
        num_scalar_prefetch=0,
        grid=(NUM_PARTIALS, nblk),
        in_specs=[
            pl.BlockSpec((tm, D), lambda c, i: (c * nblk + i, 0)),
            pl.BlockSpec((tm, D), lambda c, i: (c * nblk + i, 0)),
            pl.BlockSpec((tm, 1), lambda c, i: (c * nblk + i, 0)),
        ],
        out_specs=pl.BlockSpec((1, 1, 1), lambda c, i: (c, 0, 0)),
        scratch_shapes=[pltpu.VMEM((1, 1, 1), jnp.float32)],
    )

    partials = pl.pallas_call(
        kernel,
        out_shape=jax.ShapeDtypeStruct((NUM_PARTIALS, 1, 1), jnp.float32),
        grid_spec=grid_spec,
        compiler_params=pltpu.CompilerParams(
            dimension_semantics=("parallel", "arbitrary"),
            vmem_limit_bytes=32 * 1024 * 1024,
        ),
        cost_estimate=pl.CostEstimate(
            flops=3 * b_pad * D + 8 * b_pad,
            transcendentals=0,
            bytes_accessed=2 * b_pad * D * itemsize + b_pad * 4
                           + NUM_PARTIALS * 4,
        ),
    )(f1, f2, t)

    total = jnp.sum(partials)
    if size_average:
        return total / jnp.float32(B)
    return total


def _reference_loss(f1, f2, target, margin=MARGIN, eps=EPS, size_average=True):
    # Pure-JAX reference mirroring the PyTorch forward exactly.
    distances = jnp.sum((f2 - f1) ** 2, axis=1)
    t = target.astype(jnp.float32)
    losses = t * distances + (1.0 - t) * jax.nn.relu(
        margin - jnp.sqrt(distances + eps) ** 2)
    return jnp.mean(losses) if size_average else jnp.sum(losses)


if __name__ == "__main__":
    key = jax.random.PRNGKey(0)
    k1, k2, k3 = jax.random.split(key, 3)

    B, D = 8, 32
    feature1 = jax.random.normal(k1, (B, D), dtype=jnp.float32)
    feature2 = jax.random.normal(k2, (B, D), dtype=jnp.float32)
    target = jax.random.bernoulli(k3, 0.5, (B,)).astype(jnp.int32)

    # float32 inputs, mean and sum reductions.
    for size_average in (True, False):
        loss = contrastive_loss(feature1, feature2, target,
                                size_average=size_average)
        loss = jax.block_until_ready(loss)
        ref = _reference_loss(feature1, feature2, target,
                              size_average=size_average)
        assert jnp.allclose(loss, ref, atol=1e-5, rtol=1e-5), \
            (size_average, loss, ref)

    # Native-dtype (bf16) path: features are upcast inside the kernel.
    f1_bf = feature1.astype(jnp.bfloat16)
    f2_bf = feature2.astype(jnp.bfloat16)
    loss_bf = jax.block_until_ready(contrastive_loss(f1_bf, f2_bf, target))
    ref_bf = _reference_loss(f1_bf.astype(jnp.float32),
                             f2_bf.astype(jnp.float32), target)
    assert jnp.allclose(loss_bf, ref_bf, atol=1e-4, rtol=1e-4), (loss_bf, ref_bf)

    print("KERNEL_OK")
</pallas_src>

<mosaic_0001>
module attributes {stable_mosaic.version = 11 : i64} {
  func.func @_contrastive_loss_kernel(%arg0: i32, %arg1: i32, %arg2: memref<8x32xf32, #tpu.memory_space<vmem>>, %arg3: memref<8x32xf32, #tpu.memory_space<vmem>>, %arg4: memref<8x1xf32, #tpu.memory_space<vmem>>, %arg5: memref<1x1x1xf32, #tpu.memory_space<vmem>>, %arg6: memref<1x1x1xf32, #tpu.memory_space<vmem>>) attributes {dimension_semantics = [#tpu.dimension_semantics<parallel>, #tpu.dimension_semantics<arbitrary>], iteration_bounds = array<i64: 2, 1>, scalar_prefetch = 0 : i64, scratch_operands = 1 : i64, tpu.core_type = #tpu.core_type<tc>, window_params = [{transform_indices = @transform_0, window_bounds = array<i64: 8, 32>}, {transform_indices = @transform_1, window_bounds = array<i64: 8, 32>}, {transform_indices = @transform_2, window_bounds = array<i64: 8, 1>}, {transform_indices = @transform_3, window_bounds = array<i64: 1, 1, 1>}]} {
    %c0_i32 = arith.constant 0 : i32
    %0 = arith.cmpi eq, %arg1, %c0_i32 : i32
    %1 = arith.extui %0 : i1 to i32
    %c0_i32_0 = arith.constant 0 : i32
    %2 = arith.cmpi ne, %1, %c0_i32_0 : i32
    scf.if %2 {
      %cst_19 = arith.constant 0.000000e+00 : f32
      %32 = vector.broadcast %cst_19 : f32 to vector<1x1x1xf32>
      %c0_20 = arith.constant 0 : index
      %c0_21 = arith.constant 0 : index
      %c0_22 = arith.constant 0 : index
      %33 = vector.load %arg6[%c0_20, %c0_21, %c0_22] : memref<1x1x1xf32, #tpu.memory_space<vmem>>, vector<1x1x1xf32>
      tpu.vector_store %arg6[%c0_20, %c0_21, %c0_22], %32 {strides = array<i32>} : memref<1x1x1xf32, #tpu.memory_space<vmem>>, vector<1x1x1xf32>,
    } else {
    }
    %c0 = arith.constant 0 : index
    %c0_1 = arith.constant 0 : index
    %3 = vector.load %arg2[%c0, %c0_1] : memref<8x32xf32, #tpu.memory_space<vmem>>, vector<8x32xf32>
    %c0_2 = arith.constant 0 : index
    %c0_3 = arith.constant 0 : index
    %4 = vector.load %arg3[%c0_2, %c0_3] : memref<8x32xf32, #tpu.memory_space<vmem>>, vector<8x32xf32>
    %5 = arith.subf %4, %3 : vector<8x32xf32>
    %6 = arith.mulf %5, %5 : vector<8x32xf32>
    %cst = arith.constant dense<0.000000e+00> : vector<8xf32>
    %7 = vector.multi_reduction <add>, %6, %cst [1] : vector<8x32xf32> to vector<8xf32>
    %8 = vector.shape_cast %7 : vector<8xf32> to vector<8x1xf32>
    %c0_4 = arith.constant 0 : index
    %c0_5 = arith.constant 0 : index
    %9 = vector.load %arg4[%c0_4, %c0_5] : memref<8x1xf32, #tpu.memory_space<vmem>>, vector<8x1xf32>
    %cst_6 = arith.constant 9.99999971E-10 : f32
    %10 = vector.broadcast %cst_6 : f32 to vector<8x1xf32>
    %11 = arith.addf %8, %10 : vector<8x1xf32>
    %cst_7 = arith.constant 5.000000e-01 : f32
    %12 = vector.broadcast %cst_7 : f32 to vector<8x1xf32>
    %13 = arith.subf %12, %11 : vector<8x1xf32>
    %cst_8 = arith.constant 0.000000e+00 : f32
    %14 = vector.broadcast %cst_8 : f32 to vector<8x1xf32>
    %15 = arith.maximumf %13, %14 : vector<8x1xf32>
    %16 = arith.mulf %9, %8 : vector<8x1xf32>
    %cst_9 = arith.constant 1.000000e+00 : f32
    %17 = vector.broadcast %cst_9 : f32 to vector<8x1xf32>
    %18 = arith.subf %17, %9 : vector<8x1xf32>
    %19 = arith.mulf %18, %15 : vector<8x1xf32>
    %20 = arith.addf %16, %19 : vector<8x1xf32>
    %c0_10 = arith.constant 0 : index
    %c0_11 = arith.constant 0 : index
    %c0_12 = arith.constant 0 : index
    %21 = vector.load %arg6[%c0_10, %c0_11, %c0_12] : memref<1x1x1xf32, #tpu.memory_space<vmem>>, vector<1x1x1xf32>
    %22 = vector.shape_cast %20 : vector<8x1xf32> to vector<1x8x1xf32>
    %cst_13 = arith.constant dense<0.000000e+00> : vector<1xf32>
    %23 = vector.multi_reduction <add>, %22, %cst_13 [1, 2] : vector<1x8x1xf32> to vector<1xf32>
    %24 = vector.shape_cast %23 : vector<1xf32> to vector<1x1x1xf32>
    %25 = vector.extract %24[0, 0, 0] : f32 from vector<1x1x1xf32>
    %26 = vector.broadcast %25 : f32 to vector<1x1x1xf32>
    %27 = arith.addf %21, %26 : vector<1x1x1xf32>
    %c0_14 = arith.constant 0 : index
    %c0_15 = arith.constant 0 : index
    %c0_16 = arith.constant 0 : index
    %28 = vector.load %arg6[%c0_14, %c0_15, %c0_16] : memref<1x1x1xf32, #tpu.memory_space<vmem>>, vector<1x1x1xf32>
    tpu.vector_store %arg6[%c0_14, %c0_15, %c0_16], %27 {strides = array<i32>} : memref<1x1x1xf32, #tpu.memory_space<vmem>>, vector<1x1x1xf32>,
    %c0_i32_17 = arith.constant 0 : i32
    %29 = arith.cmpi eq, %arg1, %c0_i32_17 : i32
    %30 = arith.extui %29 : i1 to i32
    %c0_i32_18 = arith.constant 0 : i32
    %31 = arith.cmpi ne, %30, %c0_i32_18 : i32
    scf.if %31 {
      %c0_19 = arith.constant 0 : index
      %c0_20 = arith.constant 0 : index
      %c0_21 = arith.constant 0 : index
      %32 = vector.load %arg6[%c0_19, %c0_20, %c0_21] : memref<1x1x1xf32, #tpu.memory_space<vmem>>, vector<1x1x1xf32>
      %c0_22 = arith.constant 0 : index
      %c0_23 = arith.constant 0 : index
      %c0_24 = arith.constant 0 : index
      %33 = vector.load %arg5[%c0_22, %c0_23, %c0_24] : memref<1x1x1xf32, #tpu.memory_space<vmem>>, vector<1x1x1xf32>
      tpu.vector_store %arg5[%c0_22, %c0_23, %c0_24], %32 {strides = array<i32>} : memref<1x1x1xf32, #tpu.memory_space<vmem>>, vector<1x1x1xf32>,
    } else {
    }
    return
  }
  func.func @transform_0(%arg0: i32, %arg1: i32) -> (i32, i32) {
    %c1_i32 = arith.constant 1 : i32
    %0 = arith.muli %arg0, %c1_i32 : i32
    %1 = arith.addi %0, %arg1 : i32
    %c0_i32 = arith.constant 0 : i32
    %c0_i32_0 = arith.constant 0 : i32
    return %1, %c0_i32 : i32, i32
  }
  func.func @transform_1(%arg0: i32, %arg1: i32) -> (i32, i32) {
    %c1_i32 = arith.constant 1 : i32
    %0 = arith.muli %arg0, %c1_i32 : i32
    %1 = arith.addi %0, %arg1 : i32
    %c0_i32 = arith.constant 0 : i32
    %c0_i32_0 = arith.constant 0 : i32
    return %1, %c0_i32 : i32, i32
  }
  func.func @transform_2(%arg0: i32, %arg1: i32) -> (i32, i32) {
    %c1_i32 = arith.constant 1 : i32
    %0 = arith.muli %arg0, %c1_i32 : i32
    %1 = arith.addi %0, %arg1 : i32
    %c0_i32 = arith.constant 0 : i32
    %c0_i32_0 = arith.constant 0 : i32
    return %1, %c0_i32 : i32, i32
  }
  func.func @transform_3(%arg0: i32, %arg1: i32) -> (i32, i32, i32) {
    %c0_i32 = arith.constant 0 : i32
    %c0_i32_0 = arith.constant 0 : i32
    %c0_i32_1 = arith.constant 0 : i32
    return %arg0, %c0_i32, %c0_i32_0 : i32, i32, i32
  }
}

</mosaic_0001>

<llo_original>
// kernel: tpu_custom_call.1
$region0: #{tpu_custom_call.1}
  #allocation0 [shape = 'u32[]', space=smem, size = 0x4, offset = 0x4, fixed_abs, tag = 'smem constant byte address 0x4 - core index']
  #allocation1 [shape = 'u32[144,128]{1,0:T(1,128)}', space=vmem, size = 0x12000, scoped, tag = 'internal scratch']
  #allocation2 [shape = 'f32[1,1,1]{2,1,0:T(1,128)}', space=vmem, size = 0x200, scoped, tag = 'scratch operand']
  %s0 = inlined_call_operand.vmem [shape: f32[16,32], index: 0, kind: input, shape index: {}]
  %s1 = inlined_call_operand.hbm [shape: f32[16,32], index: 1, kind: input, shape index: {}]
  %s2 = inlined_call_operand.vmem [shape: f32[16,1], index: 2, kind: input, shape index: {}]
  %s3 = inlined_call_operand.vmem [shape: f32[2,1,1], index: 3, kind: output, shape index: {}]
  %s4 = sld [smem:[#allocation0]]
  $region57: #{tpu_custom_call.1} parent=0
    _
  %s6 = ssub.s32 1, %s4
  %s7 = scalar_select 0, %s6, %s4
  $region1: #{tpu_custom_call.1} parent=0
    #allocation3 [shape = 'u8[8192]{0}', space=vmem, size = 0x2000, scoped, tag = 'input window, operand 1']
    #allocation4 [shape = 's32[2]{0}', space=sflag, size = 0x8, scoped, tag = 'scoped memory for tpu_custom_call.1']
    %8 = vsyncpa [#allocation4], 0
    %s9 = scalar_lea.sflag [#allocation4], 1
    %10 = vsyncpa %s9, 0
    loop: start=0, step=1, limit=4
    $region2: #{tpu_custom_call.1} parent=1 // loop_pre_header
      _
    $region3: #{tpu_custom_call.1} parent=1 // loop_header
      %s12 = sphi 0, %s16
      %p13 = scmp.ge.s32.totalorder %s12, 4
      %s19 = sphi 0, %s31
      %s20 = sphi 0, %s27
      %s21 = sphi 0, %s19
      %s22 = sphi 0, %s20
      %s23 = sphi 0, %s21
      %s24 = sphi 0, %s22
      %s36 = sphi 0, %s38
      %s39 = sphi 0, %s36
      %s40 = sphi 0, %s39
      %s56 = sphi 0, %s40
      %s64 = sphi 0, %s66
      %s67 = sphi 0, %s64
      %s68 = sphi 0, %s67
      %s84 = sphi 0, %s68
      %s92 = sphi 0, %s94
      %s95 = sphi 0, %s92
      %s96 = sphi 0, %s95
      %s112 = sphi 0, %s96
      %s118 = sphi 0, %s120
      %s121 = sphi 0, %s118
      %s122 = sphi 0, %s121
      %s138 = sphi 0, %s122
    $region4: #{tpu_custom_call.1} parent=1 // loop_header_branch
      %15 = sbr.rel (%p13) target = $region8
    $region5: #{tpu_custom_call.1} parent=1 // loop_body
      %s17 = ssub.s32 %s12, 1
      %s18 = ssub.s32 %s12, 2
      %s25 = sadd.s32 1, %s20
      %p26 = scmp.ge.s32.totalorder %s25, 1
      %s27 = scalar_select %p26, 0, %s25
      %s28 = sadd.s32 1, %s19
      %s29 = scalar_select %p26, %s28, %s19
      %p30 = scmp.ge.s32.totalorder %s29, 2
      %s31 = scalar_select %p30, 0, %s29
      %s32 = sadd.s32 %s19, %s20
      %s33 = sadd.s32 %s31, %s27
      %s34 = ssub.s32 %s32, %s33
      %p35 = scmp.eq.s32.totalorder %s34, 0
      %s37 = sadd.s32 %s36, 1
      %s38 = scalar_select %p35, %s36, %s37
      %p41 = pneg %p35
      %p42 = scmp.eq.s32.totalorder %s12, 1
      %p43 = por %p41, %p42
      %p44 = scmp.ne.s32.totalorder %s36, %s39
      %p45 = scmp.eq.s32.totalorder %s12, 0
      %p46 = por %p44, %p45
      %p47 = scmp.ne.s32.totalorder %s36, %s39
      %p48 = scmp.eq.s32.totalorder %s17, 1
      %p49 = por %p47, %p48
      %p50 = scmp.ne.s32.totalorder %s39, %s40
      %p51 = scmp.eq.s32.totalorder %s17, 0
      %p52 = por %p50, %p51
      %p53 = scmp.ne.s32.totalorder %s39, %s40
      %p54 = scmp.eq.s32.totalorder %s18, 1
      %p55 = por %p53, %p54
      %p57 = scmp.ne.s32.totalorder %s40, %s56
      %p58 = scmp.eq.s32.totalorder %s18, 0
      %p59 = por %p57, %p58
      %s60 = sadd.s32 %s19, %s20
      %s61 = sadd.s32 %s31, %s27
      %s62 = ssub.s32 %s60, %s61
      %p63 = scmp.eq.s32.totalorder %s62, 0
      %s65 = sadd.s32 %s64, 1
      %s66 = scalar_select %p63, %s64, %s65
      %p69 = pneg %p63
      %p70 = scmp.eq.s32.totalorder %s12, 1
      %p71 = por %p69, %p70
      %p72 = scmp.ne.s32.totalorder %s64, %s67
      %p73 = scmp.eq.s32.totalorder %s12, 0
      %p74 = por %p72, %p73
      %p75 = scmp.ne.s32.totalorder %s64, %s67
      %p76 = scmp.eq.s32.totalorder %s17, 1
      %p77 = por %p75, %p76
      %p78 = scmp.ne.s32.totalorder %s67, %s68
      %p79 = scmp.eq.s32.totalorder %s17, 0
      %p80 = por %p78, %p79
      %p81 = scmp.ne.s32.totalorder %s67, %s68
      %p82 = scmp.eq.s32.totalorder %s18, 1
      %p83 = por %p81, %p82
      %p85 = scmp.ne.s32.totalorder %s68, %s84
      %p86 = scmp.eq.s32.totalorder %s18, 0
      %p87 = por %p85, %p86
      %s88 = sadd.s32 %s19, %s20
      %s89 = sadd.s32 %s31, %s27
      %s90 = ssub.s32 %s88, %s89
      %p91 = scmp.eq.s32.totalorder %s90, 0
      %s93 = sadd.s32 %s92, 1
      %s94 = scalar_select %p91, %s92, %s93
      %p97 = pneg %p91
      %p98 = scmp.eq.s32.totalorder %s12, 1
      %p99 = por %p97, %p98
      %p100 = scmp.ne.s32.totalorder %s92, %s95
      %p101 = scmp.eq.s32.totalorder %s12, 0
      %p102 = por %p100, %p101
      %p103 = scmp.ne.s32.totalorder %s92, %s95
      %p104 = scmp.eq.s32.totalorder %s17, 1
      %p105 = por %p103, %p104
      %p106 = scmp.ne.s32.totalorder %s95, %s96
      %p107 = scmp.eq.s32.totalorder %s17, 0
      %p108 = por %p106, %p107
      %p109 = scmp.ne.s32.totalorder %s95, %s96
      %p110 = scmp.eq.s32.totalorder %s18, 1
      %p111 = por %p109, %p110
      %p113 = scmp.ne.s32.totalorder %s96, %s112
      %p114 = scmp.eq.s32.totalorder %s18, 0
      %p115 = por %p113, %p114
      %s116 = ssub.s32 %s19, %s31
      %p117 = scmp.eq.s32.totalorder %s116, 0
      %s119 = sadd.s32 %s118, 1
      %s120 = scalar_select %p117, %s118, %s119
      %p123 = pneg %p117
      %p124 = scmp.eq.s32.totalorder %s12, 1
      %p125 = por %p123, %p124
      %p126 = scmp.ne.s32.totalorder %s118, %s121
      %p127 = scmp.eq.s32.totalorder %s12, 0
      %p128 = por %p126, %p127
      %p129 = scmp.ne.s32.totalorder %s118, %s121
      %p130 = scmp.eq.s32.totalorder %s17, 1
      %p131 = por %p129, %p130
      %p132 = scmp.ne.s32.totalorder %s121, %s122
      %p133 = scmp.eq.s32.totalorder %s17, 0
      %p134 = por %p132, %p133
      %p135 = scmp.ne.s32.totalorder %s121, %s122
      %p136 = scmp.eq.s32.totalorder %s18, 1
      %p137 = por %p135, %p136
      %p139 = scmp.ne.s32.totalorder %s122, %s138
      %p140 = scmp.eq.s32.totalorder %s18, 0
      %p141 = por %p139, %p140
      %p142 = scmp.le.s32.totalorder 1, %s12
      %p143 = scmp.lt.s32.totalorder %s12, 3
      %p144 = pnand %p142, %p143
      %p145 = pneg %p144
      // Predicated region
      $region9: #{tpu_custom_call.1} parent=5 // pred_check
        _
      $region10: #{tpu_custom_call.1} parent=5 // pred_check_branch
        %147 = sbr.rel (%p144) target = $region12
      $region11: #{tpu_custom_call.1} parent=5 // pred_region
        %s148 = ssub.s32 %s12, 1
      $region12: #{tpu_custom_call.1} parent=5 // pred_fallthru
        _
      %p149 = scmp.lt.s32.totalorder %s12, 2
      // Predicated region
      $region13: #{tpu_custom_call.1} parent=5 // pred_check
        %p150 = pneg %p149
      $region14: #{tpu_custom_call.1} parent=5 // pred_check_branch
        %152 = sbr.rel (%p150) target = $region16
      $region15: #{tpu_custom_call.1} parent=5 // pred_region
        // Predicated region
        $region17: #{tpu_custom_call.1} parent=15 // pred_check
          %p153 = pneg %p46
        $region18: #{tpu_custom_call.1} parent=15 // pred_check_branch
          %155 = sbr.rel (%p153) target = $region20
        $region19: #{tpu_custom_call.1} parent=15 // pred_region
          %s156 = sadd.s32 %s19, %s20
          %p157 = scmp.lt.s32.totalorder %s156, 1
          %s158 = scalar_select %p157, %s156, 1
          %s159 = smul.addr %s158, 8
          %s160 = scalar_lea.vmem %s0, %s159
          %s161 = sadd.s32 %s19, %s20
        $region20: #{tpu_custom_call.1} parent=15 // pred_fallthru
          _
        // Predicated region
        $region21: #{tpu_custom_call.1} parent=15 // pred_check
          %p162 = pneg %p74
        $region22: #{tpu_custom_call.1} parent=15 // pred_check_branch
          %164 = sbr.rel (%p162) target = $region24
        $region23: #{tpu_custom_call.1} parent=15 // pred_region
          %s165 = sand.u32 %s64, 1
          %s166 = scalar_lea.sflag [#allocation4], %s165
          %s167 = sand.u32 %s64, 1
          %s168 = smul.addr %s167, 8
          %s169 = scalar_lea.vmem [#allocation3], %s168
          %s170 = sadd.s32 %s19, %s20
          %s172 = ssub.s32 128, 128
          %173 = vsyncadd %s166, %s172
          %s174 = smul.addr %s170, 128
          %s175 = scalar_lea.hbm %s1, %s174
          %s177 = sshll.u32 %s169, 4
          %s178 = int_to_ptr.vmem [resolvable:$true] %s177
          %180 = dma.hbm_to_vmem [thread:$0]  %s175, 128, %s178, %s166
        $region24: #{tpu_custom_call.1} parent=15 // pred_fallthru
          _
        // Predicated region
        $region25: #{tpu_custom_call.1} parent=15 // pred_check
          %p181 = pneg %p102
        $region26: #{tpu_custom_call.1} parent=15 // pred_check_branch
          %183 = sbr.rel (%p181) target = $region28
        $region27: #{tpu_custom_call.1} parent=15 // pred_region
          %s184 = sadd.s32 %s19, %s20
          %p185 = scmp.lt.s32.totalorder %s184, 1
          %s186 = scalar_select %p185, %s184, 1
          %s187 = smul.addr %s186, 8
          %s188 = scalar_lea.vmem %s2, %s187
          %s189 = sadd.s32 %s19, %s20
        $region28: #{tpu_custom_call.1} parent=15 // pred_fallthru
          _
      $region16: #{tpu_custom_call.1} parent=5 // pred_fallthru
        _
      %p190 = scmp.le.s32.totalorder 1, %s12
      %p191 = scmp.lt.s32.totalorder %s12, 3
      %p192 = pnand %p190, %p191
      %p193 = pneg %p192
      // Predicated region
      $region29: #{tpu_custom_call.1} parent=5 // pred_check
        _
      $region30: #{tpu_custom_call.1} parent=5 // pred_check_branch
        %195 = sbr.rel (%p192) target = $region32
      $region31: #{tpu_custom_call.1} parent=5 // pred_region
        %s196 = ssub.s32 %s12, 1
        %s197 = sand.u32 %s67, 1
        %s198 = scalar_lea.sflag [#allocation4], %s197
        %s199 = sand.u32 %s67, 1
        %s200 = smul.addr %s199, 8
        %s201 = scalar_lea.vmem [#allocation3], %s200
        // Predicated region
        $region33: #{tpu_custom_call.1} parent=31 // pred_check
          %p202 = pneg %p80
        $region34: #{tpu_custom_call.1} parent=31 // pred_check_branch
          %204 = sbr.rel (%p202) target = $region36
        $region35: #{tpu_custom_call.1} parent=31 // pred_region
          %205 = dma.done %s198, 128
        $region36: #{tpu_custom_call.1} parent=31 // pred_fallthru
          _
        %s206 = sadd.s32 %s21, %s22
        %p207 = scmp.lt.s32.totalorder %s206, 1
        %s208 = scalar_select %p207, %s206, 1
        %s209 = smul.addr %s208, 8
        %s210 = scalar_lea.vmem %s0, %s209
        %p211 = pneg %p52
        %p212 = pneg %p49
        %s213 = sand.u32 %s67, 1
        %s214 = scalar_lea.sflag [#allocation4], %s213
        %s215 = sand.u32 %s67, 1
        %s216 = smul.addr %s215, 8
        %s217 = scalar_lea.vmem [#allocation3], %s216
        %p218 = pneg %p80
        %p219 = pneg %p77
        %s220 = sadd.s32 %s21, %s22
        %p221 = scmp.lt.s32.totalorder %s220, 1
        %s222 = scalar_select %p221, %s220, 1
        %s223 = smul.addr %s222, 8
        %s224 = scalar_lea.vmem %s2, %s223
        %p225 = pneg %p108
        %p226 = pneg %p105
        %p227 = pneg %p134
        %p228 = pneg %p131
        %p229 = scmp.lt.s32.totalorder %s21, 1
        %s230 = scalar_select %p229, %s21, 1
        %s231 = scalar_lea.vmem %s3, %s230
        %s232 = sadd.s32 %s21, %s22
        %p233 = scmp.lt.s32.totalorder %s232, 1
        %s234 = scalar_select %p233, %s232, 1
        %s235 = smul.addr %s234, 8
        %s236 = scalar_lea.vmem %s0, %s235
        %s237 = sadd.s32 %s21, %s22
        %s238 = sadd.s32 %s21, %s22
        %s239 = sadd.s32 %s21, %s22
        %p240 = scmp.lt.s32.totalorder %s239, 1
        %s241 = scalar_select %p240, %s239, 1
        %s242 = smul.addr %s241, 8
        %s243 = scalar_lea.vmem %s2, %s242
        %s244 = sadd.s32 %s21, %s22
        %p245 = scmp.lt.s32.totalorder %s21, 1
        %s246 = scalar_select %p245, %s21, 1
        %s247 = scalar_lea.vmem %s3, %s246
        %p248 = scmp.eq.s32.totalorder %s22, 0
        // Predicated region
        $region37: #{tpu_custom_call.1} parent=31 // pred_check
          %p249 = pneg %p248
        $region38: #{tpu_custom_call.1} parent=31 // pred_check_branch
          %251 = sbr.rel (%p249) target = $region40
        $region39: #{tpu_custom_call.1} parent=31 // pred_region
          %vm252 = vcmask 0
          %253 = vst.msk [vmem:[#allocation2] sm:$0x1] %vm252, 0.0
        $region40: #{tpu_custom_call.1} parent=31 // pred_fallthru
          _
        %v254 = vld [vmem:[%s236] sm:$0xff]
        %v255 = vld [vmem:[%s201] sm:$0xff]
        %v256 = vsub.f32 %v255, %v254
        %v257 = vmul.f32 %v256, %v256
        %vm258 = vcmask 261120
        %v259 = vsel %vm258, %v257, 0.0
        %260 = vadd.xlane.f32.xlu0 %v259
        %v261 = vpop.xlane.xlu0 %260
        %v262 = vld [vmem:[%s243] sm:$0xff]
        %v263 = vadd.f32 %v261, 1e-09
        %v264 = vsub.f32 0.5, %v263
        %v265 = vmax.f32 %v264, 0.0
        %v266 = vmul.f32 %v262, %v261
        %v267 = vsub.f32 1.0, %v262
        %v268 = vmul.f32 %v267, %v265
        %v269 = vadd.f32 %v266, %v268
        %v270 = vld [vmem:[#allocation2] sm:$0x1]
        %vm271 = vcmask 7168
        %v272 = vsel %vm271, %v269, 0.0
        %273 = vadd.xlane.f32.xlu0 %v272
        %v274 = vpop.xlane.xlu0 %273
        %v275 = vrot.slane %v274, 4
        %v276 = vadd.f32 %v274, %v275
        %v277 = vrot.slane %v276, 2
        %v278 = vadd.f32 %v276, %v277
        %v279 = vrot.slane %v278, 1
        %v280 = vadd.f32 %v278, %v279
        %s281 = vtos %v280
        %v282 = vstv %s281
        %v283 = vadd.f32 %v270, %v282
        %vm284 = vcmask 0
        %285 = vst.msk [vmem:[#allocation2] sm:$0x1] %vm284, %v283
        // Predicated region
        $region41: #{tpu_custom_call.1} parent=31 // pred_check
          %p286 = pneg %p248
        $region42: #{tpu_custom_call.1} parent=31 // pred_check_branch
          %288 = sbr.rel (%p286) target = $region44
        $region43: #{tpu_custom_call.1} parent=31 // pred_region
          %v289 = vld [vmem:[#allocation2] sm:$0x1]
          %290 = vst.msk [vmem:[%s247] sm:$0x1] %vm284, %v289
        $region44: #{tpu_custom_call.1} parent=31 // pred_fallthru
          _
        %p291 = scmp.lt.s32.totalorder %s21, 1
        %s292 = scalar_select %p291, %s21, 1
        %s293 = scalar_lea.vmem %s3, %s292
        // Predicated region
        $region45: #{tpu_custom_call.1} parent=31 // pred_check
          %p294 = pneg %p131
        $region46: #{tpu_custom_call.1} parent=31 // pred_check_branch
          %296 = sbr.rel (%p294) target = $region48
        $region47: #{tpu_custom_call.1} parent=31 // pred_region
          _
        $region48: #{tpu_custom_call.1} parent=31 // pred_fallthru
          _
      $region32: #{tpu_custom_call.1} parent=5 // pred_fallthru
        _
      %p297 = scmp.le.s32.totalorder 2, %s12
      // Predicated region
      $region49: #{tpu_custom_call.1} parent=5 // pred_check
        %p298 = pneg %p297
      $region50: #{tpu_custom_call.1} parent=5 // pred_check_branch
        %300 = sbr.rel (%p298) target = $region52
      $region51: #{tpu_custom_call.1} parent=5 // pred_region
        %s301 = ssub.s32 %s12, 2
        // Predicated region
        $region53: #{tpu_custom_call.1} parent=51 // pred_check
          %p302 = pneg %p137
        $region54: #{tpu_custom_call.1} parent=51 // pred_check_branch
          %304 = sbr.rel (%p302) target = $region56
        $region55: #{tpu_custom_call.1} parent=51 // pred_region
          %p305 = scmp.lt.s32.totalorder %s23, 1
          %s306 = scalar_select %p305, %s23, 1
          %s307 = scalar_lea.vmem %s3, %s306
        $region56: #{tpu_custom_call.1} parent=51 // pred_fallthru
          _
      $region52: #{tpu_custom_call.1} parent=5 // pred_fallthru
        _
    $region6: #{tpu_custom_call.1} parent=1 // loop_footer
      %s16 = sadd.s32 1, %s12
    $region7: #{tpu_custom_call.1} parent=1 // loop_footer_branch
      %11 = sbr.rel target = $region3
    $region8: #{tpu_custom_call.1} parent=1 // loop_exit
      _
    %308 = vsyncpa [#allocation4], 1
    %s309 = scalar_lea.sflag [#allocation4], 1
    %310 = vsyncpa %s309, 1

</llo_original>
